<compile_context>
chip_gen: v7x
topology: tpu7x:2x2x1
jax: 0.10.0
libtpu: 0.0.40
codegen_flags: <defaults>
</compile_context>

<pallas_src>
import functools

import jax
import jax.numpy as jnp
from jax.experimental import pallas as pl
from jax.experimental.pallas import tpu as pltpu


def _round_up(a, b):
    return -(-a // b) * b


def _cm_kernel(x_ref, y_ref,
               w1c_ref, b1c_ref,
               w2t_ref, b2c_ref,
               w3t_ref, b3c_ref,
               w4p_ref, b4_ref,
               yhat_ref, loss_ref):
    """Transposed / lane-dense MLP.  x_ref, y_ref, yhat_ref, loss_ref: (1, tm)."""
    cdt = w2t_ref.dtype                                        # compute dtype (bf16 or f32)
    x = x_ref[...].astype(cdt)                                 # (1, tm)

    # Layer 1 (c_in == 1): broadcast multiply on the VPU, in the compute dtype.
    h = jnp.maximum(w1c_ref[...] * x + b1c_ref[...], 0.0)      # (H, tm)

    # Layers 2 & 3: (H, H) @ (H, tm) on the MXU.  With bf16 operands the MXU
    # accumulates in f32 internally; keeping the output/epilogue in cdt avoids
    # full-tile conversion passes on the (H, tm) activations.
    h = jnp.maximum(
        jnp.dot(w2t_ref[...], h, preferred_element_type=cdt) + b2c_ref[...], 0.0)
    h = jnp.maximum(
        jnp.dot(w3t_ref[...], h, preferred_element_type=cdt) + b3c_ref[...], 0.0)

    # Layer 4 (c_out == 1): MXU dot with w4 packed into row 0 of an (8, H) LHS
    # (rows 1..7 are zero -> sublane-aligned M), f32 accumulation; take row 0.
    yh = jnp.dot(w4p_ref[...], h, preferred_element_type=jnp.float32)   # (8, tm)
    y_hat = yh[0:1, :] + b4_ref[...]                                     # (1, tm) f32

    yhat_st = y_hat.astype(yhat_ref.dtype)
    yhat_ref[...] = yhat_st

    # c_out == 1, so the channel-sum of the squared error is just the square.
    # Loss is computed from the stored y_hat so the two outputs are consistent.
    d = y_ref[...].astype(jnp.float32) - yhat_st.astype(jnp.float32)
    loss_ref[...] = (d * d).astype(loss_ref.dtype)


@functools.partial(jax.jit, static_argnames=("tm", "use_bf16"))
def cm_baseline_forward(x, y, params, *, tm=8192, use_bf16=True):
    """x: (B, L, 1), y: (B, L, 1).  Returns (y_hat (B, L, 1), loss (B, L))."""
    w1, b1, w2, b2, w3, b3, w4, b4 = params
    B, L, c_in = x.shape
    c_out = y.shape[-1]
    H = w1.shape[1]
    # Kernel is specialised to the module defaults (Conv1d 1->H->H->H->1).
    # TODO(synk): general c_in/c_out would use MXU dots for the first layer too.
    assert c_in == 1 and c_out == 1, "kernel specialised to input_size=output_size=1"

    M = B * L
    m128 = _round_up(M, 128)
    # Lane-aligned tile over positions.  Keep the grid at >= 2 steps so the
    # 'parallel' axis can split across v7x's two TensorCores (harmless on the
    # single-TC v5e/v6e).  tm=8192 keeps VMEM use to ~8-16 MiB of activations.
    tm_eff = min(tm, m128)
    if m128 >= 256:
        tm_eff = min(tm_eff, m128 // 2)
    tm_eff = max(128, (tm_eff // 128) * 128)
    M_pad = _round_up(M, tm_eff)
    grid = (M_pad // tm_eff,)

    pad = M_pad - M
    x_flat = x.reshape(M)
    y_flat = y.reshape(M)
    if pad:
        x_flat = jnp.pad(x_flat, (0, pad))
        y_flat = jnp.pad(y_flat, (0, pad))
    x_row = x_flat.reshape(1, M_pad)
    y_row = y_flat.reshape(1, M_pad)

    # One-time weight re-layout (transposed matmul weights, column biases),
    # pre-cast to the MXU compute dtype.
    f32 = jnp.float32
    cdt = jnp.bfloat16 if use_bf16 else f32
    w1c = w1.reshape(H, 1).astype(cdt)
    b1c = b1.reshape(H, 1).astype(cdt)
    w2t = w2.T.astype(cdt)
    b2c = b2.reshape(H, 1).astype(cdt)
    w3t = w3.T.astype(cdt)
    b3c = b3.reshape(H, 1).astype(cdt)
    w4p = jnp.zeros((8, H), cdt).at[0, :].set(w4.reshape(H).astype(cdt))
    b4r = b4.reshape(1, 1).astype(f32)

    def full(arr):
        nd = arr.ndim
        return pl.BlockSpec(arr.shape, lambda i, _nd=nd: (0,) * _nd)

    row_spec = pl.BlockSpec((1, tm_eff), lambda i: (0, i))

    weight_bytes = (2 * H * H + 5 * H + 9) * (2 if use_bf16 else 4)
    cost = pl.CostEstimate(
        flops=int(M_pad) * (4 * H * H + 6 * H + 8),
        transcendentals=0,
        bytes_accessed=int(M_pad) * 4 * 4 + int(weight_bytes),
    )

    y_hat_row, loss_row = pl.pallas_call(
        _cm_kernel,
        out_shape=(
            jax.ShapeDtypeStruct((1, M_pad), x.dtype),
            jax.ShapeDtypeStruct((1, M_pad), jnp.float32),
        ),
        grid_spec=pltpu.PrefetchScalarGridSpec(
            num_scalar_prefetch=0,
            grid=grid,
            in_specs=[
                row_spec,                 # x positions (lane-dense)
                row_spec,                 # y positions (lane-dense)
                full(w1c), full(b1c),
                full(w2t), full(b2c),
                full(w3t), full(b3c),
                full(w4p), full(b4r),
            ],
            out_specs=[row_spec, row_spec],
        ),
        compiler_params=pltpu.CompilerParams(
            dimension_semantics=("parallel",),
            vmem_limit_bytes=48 * 1024 * 1024,
        ),
        cost_estimate=cost,
    )(x_row, y_row, w1c, b1c, w2t, b2c, w3t, b3c, w4p, b4r)

    y_hat = y_hat_row[0, :M].reshape(B, L, c_out)
    loss = loss_row[0, :M].reshape(B, L)
    return y_hat, loss


def init_params(key, input_size=1, hidden_size=128, output_size=1):
    """Deterministic synthetic init.  Weights stored as (in, out) matmul mats,
    equivalent to PyTorch Conv1d(kernel_size=1) weight (out, in, 1) transposed."""
    ks = jax.random.split(key, 8)

    def u(k, shape, fan_in):
        bound = 1.0 / jnp.sqrt(fan_in)
        return jax.random.uniform(k, shape, jnp.float32, -bound, bound)

    w1 = u(ks[0], (input_size, hidden_size), input_size)
    b1 = u(ks[1], (hidden_size,), input_size)
    w2 = u(ks[2], (hidden_size, hidden_size), hidden_size)
    b2 = u(ks[3], (hidden_size,), hidden_size)
    w3 = u(ks[4], (hidden_size, hidden_size), hidden_size)
    b3 = u(ks[5], (hidden_size,), hidden_size)
    w4 = u(ks[6], (hidden_size, output_size), hidden_size)
    b4 = u(ks[7], (output_size,), hidden_size)
    return (w1, b1, w2, b2, w3, b3, w4, b4)


def reference_forward(x, y, params):
    w1, b1, w2, b2, w3, b3, w4, b4 = params
    h = jnp.maximum(x @ w1 + b1, 0.0)
    h = jnp.maximum(h @ w2 + b2, 0.0)
    h = jnp.maximum(h @ w3 + b3, 0.0)
    y_hat = h @ w4 + b4
    loss = jnp.sum((y - y_hat) ** 2, axis=-1)
    return y_hat, loss


if __name__ == "__main__":
    key = jax.random.PRNGKey(0)
    k_p, k_x, k_y = jax.random.split(key, 3)

    input_size, hidden_size, output_size = 1, 128, 1
    params = init_params(k_p, input_size, hidden_size, output_size)

    # Small shape consistent with the module (single grid step).
    B, L = 2, 8
    x = jax.random.normal(k_x, (B, L, input_size), jnp.float32)
    y = jax.random.normal(k_y, (B, L, output_size), jnp.float32)
    yh_ref, ls_ref = reference_forward(x, y, params)

    # Exact-parity path (f32 MXU operands): strict tolerance.
    yh32, ls32 = cm_baseline_forward(x, y, params, use_bf16=False)
    jax.block_until_ready((yh32, ls32))
    assert yh32.shape == (B, L, output_size) and ls32.shape == (B, L)
    assert jnp.allclose(yh32, yh_ref, atol=1e-5, rtol=1e-5)
    assert jnp.allclose(ls32, ls_ref, atol=1e-5, rtol=1e-5)

    # Default fast path (bf16 MXU operands, f32 accumulation): relaxed tolerance
    # vs. the f32 reference (expected numeric difference, not a bug).
    yh_bf, ls_bf = cm_baseline_forward(x, y, params)
    jax.block_until_ready((yh_bf, ls_bf))
    assert jnp.allclose(yh_bf, yh_ref, atol=1e-1, rtol=1e-1)
    assert jnp.allclose(ls_bf, ls_ref, atol=2e-1, rtol=1e-1)

    # Ragged / multi-step grid check (M=150 -> tm=128, grid=2, tail padding).
    B2, L2 = 3, 50
    x2 = jax.random.normal(jax.random.PRNGKey(1), (B2, L2, input_size), jnp.float32)
    y2 = jax.random.normal(jax.random.PRNGKey(2), (B2, L2, output_size), jnp.float32)
    yh2_ref, ls2_ref = reference_forward(x2, y2, params)

    yh2_bf, ls2_bf = cm_baseline_forward(x2, y2, params)
    jax.block_until_ready((yh2_bf, ls2_bf))
    assert jnp.allclose(yh2_bf, yh2_ref, atol=1e-1, rtol=1e-1)
    assert jnp.allclose(ls2_bf, ls2_ref, atol=2e-1, rtol=1e-1)

    yh2_32, ls2_32 = cm_baseline_forward(x2, y2, params, use_bf16=False)
    jax.block_until_ready((yh2_32, ls2_32))
    assert jnp.allclose(yh2_32, yh2_ref, atol=1e-5, rtol=1e-5)
    assert jnp.allclose(ls2_32, ls2_ref, atol=1e-5, rtol=1e-5)

    print("KERNEL_OK")
</pallas_src>

<mosaic_0001>
module attributes {stable_mosaic.version = 11 : i64} {
  func.func @_cm_kernel(%arg0: i32, %arg1: memref<1x128xf32, #tpu.memory_space<vmem>>, %arg2: memref<1x128xf32, #tpu.memory_space<vmem>>, %arg3: memref<128x1xf32, #tpu.memory_space<vmem>>, %arg4: memref<128x1xf32, #tpu.memory_space<vmem>>, %arg5: memref<128x128xf32, #tpu.memory_space<vmem>>, %arg6: memref<128x1xf32, #tpu.memory_space<vmem>>, %arg7: memref<128x128xf32, #tpu.memory_space<vmem>>, %arg8: memref<128x1xf32, #tpu.memory_space<vmem>>, %arg9: memref<8x128xf32, #tpu.memory_space<vmem>>, %arg10: memref<1x1xf32, #tpu.memory_space<vmem>>, %arg11: memref<1x128xf32, #tpu.memory_space<vmem>>, %arg12: memref<1x128xf32, #tpu.memory_space<vmem>>) attributes {dimension_semantics = [#tpu.dimension_semantics<parallel>], iteration_bounds = array<i64: 1>, scalar_prefetch = 0 : i64, scratch_operands = 0 : i64, tpu.core_type = #tpu.core_type<tc>, window_params = [{transform_indices = @transform_0, window_bounds = array<i64: 1, 128>}, {transform_indices = @transform_1, window_bounds = array<i64: 1, 128>}, {pipeline_mode = #tpu.pipeline_mode<synchronous>, transform_indices = @transform_2, window_bounds = array<i64: 128, 1>}, {pipeline_mode = #tpu.pipeline_mode<synchronous>, transform_indices = @transform_3, window_bounds = array<i64: 128, 1>}, {pipeline_mode = #tpu.pipeline_mode<synchronous>, transform_indices = @transform_4, window_bounds = array<i64: 128, 128>}, {pipeline_mode = #tpu.pipeline_mode<synchronous>, transform_indices = @transform_5, window_bounds = array<i64: 128, 1>}, {pipeline_mode = #tpu.pipeline_mode<synchronous>, transform_indices = @transform_6, window_bounds = array<i64: 128, 128>}, {pipeline_mode = #tpu.pipeline_mode<synchronous>, transform_indices = @transform_7, window_bounds = array<i64: 128, 1>}, {pipeline_mode = #tpu.pipeline_mode<synchronous>, transform_indices = @transform_8, window_bounds = array<i64: 8, 128>}, {pipeline_mode = #tpu.pipeline_mode<synchronous>, transform_indices = @transform_9, window_bounds = array<i64: 1, 1>}, {transform_indices = @transform_10, window_bounds = array<i64: 1, 128>}, {transform_indices = @transform_11, window_bounds = array<i64: 1, 128>}]} {
    %c0 = arith.constant 0 : index
    %c0_0 = arith.constant 0 : index
    %0 = vector.load %arg1[%c0, %c0_0] : memref<1x128xf32, #tpu.memory_space<vmem>>, vector<1x128xf32>
    %c0_1 = arith.constant 0 : index
    %c0_2 = arith.constant 0 : index
    %1 = vector.load %arg3[%c0_1, %c0_2] : memref<128x1xf32, #tpu.memory_space<vmem>>, vector<128x1xf32>
    %2 = vector.broadcast %1 : vector<128x1xf32> to vector<128x128xf32>
    %3 = vector.broadcast %0 : vector<1x128xf32> to vector<128x128xf32>
    %4 = arith.mulf %2, %3 : vector<128x128xf32>
    %c0_3 = arith.constant 0 : index
    %c0_4 = arith.constant 0 : index
    %5 = vector.load %arg4[%c0_3, %c0_4] : memref<128x1xf32, #tpu.memory_space<vmem>>, vector<128x1xf32>
    %6 = vector.broadcast %5 : vector<128x1xf32> to vector<128x128xf32>
    %7 = arith.addf %4, %6 : vector<128x128xf32>
    %cst = arith.constant 0.000000e+00 : f32
    %8 = vector.broadcast %cst : f32 to vector<128x128xf32>
    %9 = arith.maximumf %7, %8 : vector<128x128xf32>
    %c0_5 = arith.constant 0 : index
    %c0_6 = arith.constant 0 : index
    %10 = vector.load %arg5[%c0_5, %c0_6] : memref<128x128xf32, #tpu.memory_space<vmem>>, vector<128x128xf32>
    %cst_7 = arith.constant dense<0.000000e+00> : vector<128x128xf32>
    %11 = tpu.matmul %10, %9, %cst_7 {dimension_numbers = #tpu.dot_dimension_numbers<[1], [0], [0], [1], [0, 0, 1, 1], [], []>} : vector<128x128xf32>, vector<128x128xf32>, vector<128x128xf32> -> vector<128x128xf32>
    %c0_8 = arith.constant 0 : index
    %c0_9 = arith.constant 0 : index
    %12 = vector.load %arg6[%c0_8, %c0_9] : memref<128x1xf32, #tpu.memory_space<vmem>>, vector<128x1xf32>
    %13 = vector.broadcast %12 : vector<128x1xf32> to vector<128x128xf32>
    %14 = arith.addf %11, %13 : vector<128x128xf32>
    %cst_10 = arith.constant 0.000000e+00 : f32
    %15 = vector.broadcast %cst_10 : f32 to vector<128x128xf32>
    %16 = arith.maximumf %14, %15 : vector<128x128xf32>
    %c0_11 = arith.constant 0 : index
    %c0_12 = arith.constant 0 : index
    %17 = vector.load %arg7[%c0_11, %c0_12] : memref<128x128xf32, #tpu.memory_space<vmem>>, vector<128x128xf32>
    %cst_13 = arith.constant dense<0.000000e+00> : vector<128x128xf32>
    %18 = tpu.matmul %17, %16, %cst_13 {dimension_numbers = #tpu.dot_dimension_numbers<[1], [0], [0], [1], [0, 0, 1, 1], [], []>} : vector<128x128xf32>, vector<128x128xf32>, vector<128x128xf32> -> vector<128x128xf32>
    %c0_14 = arith.constant 0 : index
    %c0_15 = arith.constant 0 : index
    %19 = vector.load %arg8[%c0_14, %c0_15] : memref<128x1xf32, #tpu.memory_space<vmem>>, vector<128x1xf32>
    %20 = vector.broadcast %19 : vector<128x1xf32> to vector<128x128xf32>
    %21 = arith.addf %18, %20 : vector<128x128xf32>
    %cst_16 = arith.constant 0.000000e+00 : f32
    %22 = vector.broadcast %cst_16 : f32 to vector<128x128xf32>
    %23 = arith.maximumf %21, %22 : vector<128x128xf32>
    %c0_17 = arith.constant 0 : index
    %c0_18 = arith.constant 0 : index
    %24 = vector.load %arg9[%c0_17, %c0_18] : memref<8x128xf32, #tpu.memory_space<vmem>>, vector<8x128xf32>
    %cst_19 = arith.constant dense<0.000000e+00> : vector<8x128xf32>
    %25 = tpu.matmul %24, %23, %cst_19 {dimension_numbers = #tpu.dot_dimension_numbers<[1], [0], [0], [1], [0, 0, 1, 1], [], []>} : vector<8x128xf32>, vector<128x128xf32>, vector<8x128xf32> -> vector<8x128xf32>
    %26 = vector.extract_strided_slice %25 {offsets = [0, 0], sizes = [1, 128], strides = [1, 1]} : vector<8x128xf32> to vector<1x128xf32>
    %c0_20 = arith.constant 0 : index
    %c0_21 = arith.constant 0 : index
    %27 = vector.load %arg10[%c0_20, %c0_21] : memref<1x1xf32, #tpu.memory_space<vmem>>, vector<1x1xf32>
    %28 = vector.broadcast %27 : vector<1x1xf32> to vector<1x128xf32>
    %29 = arith.addf %26, %28 : vector<1x128xf32>
    %c0_22 = arith.constant 0 : index
    %c0_23 = arith.constant 0 : index
    %30 = vector.load %arg11[%c0_22, %c0_23] : memref<1x128xf32, #tpu.memory_space<vmem>>, vector<1x128xf32>
    tpu.vector_store %arg11[%c0_22, %c0_23], %29 {strides = array<i32>} : memref<1x128xf32, #tpu.memory_space<vmem>>, vector<1x128xf32>,
    %c0_24 = arith.constant 0 : index
    %c0_25 = arith.constant 0 : index
    %31 = vector.load %arg2[%c0_24, %c0_25] : memref<1x128xf32, #tpu.memory_space<vmem>>, vector<1x128xf32>
    %32 = arith.subf %31, %29 : vector<1x128xf32>
    %33 = arith.mulf %32, %32 : vector<1x128xf32>
    %c0_26 = arith.constant 0 : index
    %c0_27 = arith.constant 0 : index
    %34 = vector.load %arg12[%c0_26, %c0_27] : memref<1x128xf32, #tpu.memory_space<vmem>>, vector<1x128xf32>
    tpu.vector_store %arg12[%c0_26, %c0_27], %33 {strides = array<i32>} : memref<1x128xf32, #tpu.memory_space<vmem>>, vector<1x128xf32>,
    return
  }
  func.func @transform_0(%arg0: i32) -> (i32, i32) {
    %c0_i32 = arith.constant 0 : i32
    %c0_i32_0 = arith.constant 0 : i32
    return %c0_i32, %arg0 : i32, i32
  }
  func.func @transform_1(%arg0: i32) -> (i32, i32) {
    %c0_i32 = arith.constant 0 : i32
    %c0_i32_0 = arith.constant 0 : i32
    return %c0_i32, %arg0 : i32, i32
  }
  func.func @transform_2(%arg0: i32) -> (i32, i32) {
    %c0_i32 = arith.constant 0 : i32
    %c0_i32_0 = arith.constant 0 : i32
    %c0_i32_1 = arith.constant 0 : i32
    return %c0_i32, %c0_i32_0 : i32, i32
  }
  func.func @transform_3(%arg0: i32) -> (i32, i32) {
    %c0_i32 = arith.constant 0 : i32
    %c0_i32_0 = arith.constant 0 : i32
    %c0_i32_1 = arith.constant 0 : i32
    return %c0_i32, %c0_i32_0 : i32, i32
  }
  func.func @transform_4(%arg0: i32) -> (i32, i32) {
    %c0_i32 = arith.constant 0 : i32
    %c0_i32_0 = arith.constant 0 : i32
    %c0_i32_1 = arith.constant 0 : i32
    return %c0_i32, %c0_i32_0 : i32, i32
  }
  func.func @transform_5(%arg0: i32) -> (i32, i32) {
    %c0_i32 = arith.constant 0 : i32
    %c0_i32_0 = arith.constant 0 : i32
    %c0_i32_1 = arith.constant 0 : i32
    return %c0_i32, %c0_i32_0 : i32, i32
  }
  func.func @transform_6(%arg0: i32) -> (i32, i32) {
    %c0_i32 = arith.constant 0 : i32
    %c0_i32_0 = arith.constant 0 : i32
    %c0_i32_1 = arith.constant 0 : i32
    return %c0_i32, %c0_i32_0 : i32, i32
  }
  func.func @transform_7(%arg0: i32) -> (i32, i32) {
    %c0_i32 = arith.constant 0 : i32
    %c0_i32_0 = arith.constant 0 : i32
    %c0_i32_1 = arith.constant 0 : i32
    return %c0_i32, %c0_i32_0 : i32, i32
  }
  func.func @transform_8(%arg0: i32) -> (i32, i32) {
    %c0_i32 = arith.constant 0 : i32
    %c0_i32_0 = arith.constant 0 : i32
    %c0_i32_1 = arith.constant 0 : i32
    return %c0_i32, %c0_i32_0 : i32, i32
  }
  func.func @transform_9(%arg0: i32) -> (i32, i32) {
    %c0_i32 = arith.constant 0 : i32
    %c0_i32_0 = arith.constant 0 : i32
    %c0_i32_1 = arith.constant 0 : i32
    return %c0_i32, %c0_i32_0 : i32, i32
  }
  func.func @transform_10(%arg0: i32) -> (i32, i32) {
    %c0_i32 = arith.constant 0 : i32
    %c0_i32_0 = arith.constant 0 : i32
    return %c0_i32, %arg0 : i32, i32
  }
  func.func @transform_11(%arg0: i32) -> (i32, i32) {
    %c0_i32 = arith.constant 0 : i32
    %c0_i32_0 = arith.constant 0 : i32
    return %c0_i32, %arg0 : i32, i32
  }
}

</mosaic_0001>

<llo_original>
// kernel: squeeze.3
$region0: #{squeeze.3}
  %s0 = inlined_call_operand.vmem [shape: f32[16], index: 0, kind: input, shape index: {}]
  %s1 = inlined_call_operand.hbm [shape: f32[2,8], index: 1, kind: output, shape index: {}]
  $region1: #{squeeze.3} parent=0
    #allocation0 [shape = 'u8[1024]{0}', space=vmem, size = 0x400, scoped, tag = 'operand span for operand 1']
    #allocation1 [shape = 's32[1]{0}', space=sflag, size = 0x4, scoped, tag = 'scoped memory for squeeze.3']
    #allocation2 [shape = 'u8[4096]{0}', space=vmem, size = 0x1000, scoped, tag = 'scoped mem for output reshape']
    #allocation3 [shape = 'u8[4096]{0}', space=vmem, size = 0x1000, scoped, tag = 'scoped mem for input reshape']
    %2 = vsyncpa [#allocation1], 0
    %s4 = sshllo.u32 0, 1
    %v5 = vld [vmem:[%s0] sm:%s4]
    %6 = vst [vmem:[#allocation3] sm:%s4] %v5
    %v7 = vld [vmem:[#allocation3] sm:$0x1]
    %vm8 = vcmask 64512
    %9 = vst.msk [vmem:[#allocation2] sm:$0x1] %vm8, %v7
    %v10 = vld [vmem:[#allocation3] sm:$0x1]
    %11 = vrot.lane.b32.xlu0 %v10, 120
    %v12 = vpop.permute.xlu0 %11
    %vm13 = vcmask 64512
    %s14 = scalar_lea.vmem [#allocation2], 1
    %15 = vst.msk [vmem:[%s14] sm:$0x1] %vm13, %v12
    %s17 = sshllo.u32 0, 2
    %v19 = vld [vmem:[#allocation2] sm:%s17]
    %s20 = sshllo.u32 0, 2
    %21 = vst [vmem:[#allocation0] sm:%s20] %v19
    %s23 = ssub.s32 32, 32
    %24 = vsyncadd [#allocation1], %s23
    %s26 = sshll.u32 [#allocation0], 4
    %s27 = int_to_ptr.vmem [resolvable:$true] %s26
    %29 = dma.vmem_to_hbm [thread:$0]  %s27, 32, %s1, [#allocation1]
    %30 = dma.done [#allocation1], 32
    %31 = vsyncpa [#allocation1], 1

// kernel: squeeze.2
$region0: #{squeeze.2}
  %s0 = inlined_call_operand.vmem [shape: f32[16], index: 0, kind: input, shape index: {}]
  %s1 = inlined_call_operand.hbm [shape: f32[2,8,1], index: 1, kind: output, shape index: {}]
  $region1: #{squeeze.2} parent=0
    #allocation0 [shape = 'u8[1024]{0}', space=vmem, size = 0x400, scoped, tag = 'operand span for operand 1']
    #allocation1 [shape = 's32[1]{0}', space=sflag, size = 0x4, scoped, tag = 'scoped memory for squeeze.2']
    #allocation2 [shape = 'u8[4096]{0}', space=vmem, size = 0x1000, scoped, tag = 'scoped mem for output reshape']
    #allocation3 [shape = 'u8[4096]{0}', space=vmem, size = 0x1000, scoped, tag = 'scoped mem for input reshape']
    %2 = vsyncpa [#allocation1], 0
    %s4 = sshllo.u32 0, 1
    %v5 = vld [vmem:[%s0] sm:%s4]
    %6 = vst [vmem:[#allocation3] sm:%s4] %v5
    %v7 = vld [vmem:[#allocation3] sm:$0x1]
    %vm8 = vcmask 64512
    %9 = vst.msk [vmem:[#allocation2] sm:$0x1] %vm8, %v7
    %v10 = vld [vmem:[#allocation3] sm:$0x1]
    %11 = vrot.lane.b32.xlu0 %v10, 120
    %v12 = vpop.permute.xlu0 %11
    %vm13 = vcmask 64512
    %s14 = scalar_lea.vmem [#allocation2], 1
    %15 = vst.msk [vmem:[%s14] sm:$0x1] %vm13, %v12
    %s17 = sshllo.u32 0, 2
    %v19 = vld [vmem:[#allocation2] sm:%s17]
    %s20 = sshllo.u32 0, 2
    %21 = vst [vmem:[#allocation0] sm:%s20] %v19
    %s23 = ssub.s32 32, 32
    %24 = vsyncadd [#allocation1], %s23
    %s26 = sshll.u32 [#allocation0], 4
    %s27 = int_to_ptr.vmem [resolvable:$true] %s26
    %29 = dma.vmem_to_hbm [thread:$0]  %s27, 32, %s1, [#allocation1]
    %30 = dma.done [#allocation1], 32
    %31 = vsyncpa [#allocation1], 1

// kernel: cm_baseline_forward.1
$region0: #{cm_baseline_forward.1}
  #allocation0 [shape = 'u32[]', space=smem, size = 0x4, offset = 0x4, fixed_abs, tag = 'smem constant byte address 0x4 - core index']
  #allocation1 [shape = 'u32[144,128]{1,0:T(1,128)}', space=vmem, size = 0x12000, scoped, tag = 'internal scratch']
  #allocation2 [shape = 'f32[1,1]{1,0:T(1,128)S(1)}', space=vmem, size = 0x200, scoped, tag = 'scoped memory for cm_baseline_forward.1']
  %s0 = inlined_call_operand.vmem [shape: f32[1,128], index: 0, kind: input, shape index: {}]
  %s1 = inlined_call_operand.vmem [shape: f32[1,128], index: 1, kind: input, shape index: {}]
  %s2 = inlined_call_operand.vmem [shape: f32[128,1], index: 2, kind: input, shape index: {}]
  %s3 = inlined_call_operand.vmem [shape: f32[128,1], index: 3, kind: input, shape index: {}]
  %s4 = inlined_call_operand.vmem [shape: f32[128,128], index: 4, kind: input, shape index: {}]
  %s5 = inlined_call_operand.vmem [shape: f32[128,1], index: 5, kind: input, shape index: {}]
  %s6 = inlined_call_operand.vmem [shape: f32[128,128], index: 6, kind: input, shape index: {}]
  %s7 = inlined_call_operand.vmem [shape: f32[128,1], index: 7, kind: input, shape index: {}]
  %s8 = inlined_call_operand.vmem [shape: f32[8,128], index: 8, kind: input, shape index: {}]
  %s9 = inlined_call_operand.<no memory space> [shape: f32[1,1], index: 9, kind: input, shape index: {}]
  %s10 = inlined_call_operand.vmem [shape: f32[1,128], index: 10, kind: output, shape index: {0}]
  %s11 = inlined_call_operand.vmem [shape: f32[1,128], index: 11, kind: output, shape index: {1}]
  %12 = xla_tuple %s10, %s11
  %s13 = sld [smem:[#allocation0]]
  $region58: #{cm_baseline_forward.1} parent=0
    _
  %s15 = ssub.s32 1, %s13
  %s16 = scalar_select 0, %s15, %s13
  %v17 = vstv %s9
  %18 = vst [vmem:[#allocation2] sm:$0x1] %v17
  // Predicated region
  $region2: #{cm_baseline_forward.1} parent=0 // pred_check
    _
  $region3: #{cm_baseline_forward.1} parent=0 // pred_check_branch
    %20 = sbr.rel (0) target = $region5
  $region4: #{cm_baseline_forward.1} parent=0 // pred_region
    _
  $region5: #{cm_baseline_forward.1} parent=0 // pred_fallthru
    _
  // Predicated region
  $region6: #{cm_baseline_forward.1} parent=0 // pred_check
    _
  $region7: #{cm_baseline_forward.1} parent=0 // pred_check_branch
    %22 = sbr.rel (0) target = $region9
  $region8: #{cm_baseline_forward.1} parent=0 // pred_region
    _
  $region9: #{cm_baseline_forward.1} parent=0 // pred_fallthru
    _
  // Predicated region
  $region10: #{cm_baseline_forward.1} parent=0 // pred_check
    _
  $region11: #{cm_baseline_forward.1} parent=0 // pred_check_branch
    %24 = sbr.rel (0) target = $region13
  $region12: #{cm_baseline_forward.1} parent=0 // pred_region
    _
  $region13: #{cm_baseline_forward.1} parent=0 // pred_fallthru
    _
  // Predicated region
  $region14: #{cm_baseline_forward.1} parent=0 // pred_check
    _
  $region15: #{cm_baseline_forward.1} parent=0 // pred_check_branch
    %26 = sbr.rel (0) target = $region17
  $region16: #{cm_baseline_forward.1} parent=0 // pred_region
    _
  $region17: #{cm_baseline_forward.1} parent=0 // pred_fallthru
    _
  // Predicated region
  $region18: #{cm_baseline_forward.1} parent=0 // pred_check
    _
  $region19: #{cm_baseline_forward.1} parent=0 // pred_check_branch
    %28 = sbr.rel (0) target = $region21
  $region20: #{cm_baseline_forward.1} parent=0 // pred_region
    _
  $region21: #{cm_baseline_forward.1} parent=0 // pred_fallthru
    _
  // Predicated region
  $region22: #{cm_baseline_forward.1} parent=0 // pred_check
    _
  $region23: #{cm_baseline_forward.1} parent=0 // pred_check_branch
    %30 = sbr.rel (0) target = $region25
  $region24: #{cm_baseline_forward.1} parent=0 // pred_region
    _
  $region25: #{cm_baseline_forward.1} parent=0 // pred_fallthru
    _
  // Predicated region
  $region26: #{cm_baseline_forward.1} parent=0 // pred_check
    _
  $region27: #{cm_baseline_forward.1} parent=0 // pred_check_branch
    %32 = sbr.rel (0) target = $region29
  $region28: #{cm_baseline_forward.1} parent=0 // pred_region
    _
  $region29: #{cm_baseline_forward.1} parent=0 // pred_fallthru
    _
  // Predicated region
  $region30: #{cm_baseline_forward.1} parent=0 // pred_check
    _
  $region31: #{cm_baseline_forward.1} parent=0 // pred_check_branch
    %34 = sbr.rel (0) target = $region33
  $region32: #{cm_baseline_forward.1} parent=0 // pred_region
    _
  $region33: #{cm_baseline_forward.1} parent=0 // pred_fallthru
    _
  // Predicated region
  $region34: #{cm_baseline_forward.1} parent=0 // pred_check
    _
  $region35: #{cm_baseline_forward.1} parent=0 // pred_check_branch
    %36 = sbr.rel (0) target = $region37
  $region36: #{cm_baseline_forward.1} parent=0 // pred_region
    _
  $region37: #{cm_baseline_forward.1} parent=0 // pred_fallthru
    _
  // Predicated region
  $region38: #{cm_baseline_forward.1} parent=0 // pred_check
    _
  $region39: #{cm_baseline_forward.1} parent=0 // pred_check_branch
    %38 = sbr.rel (0) target = $region41
  $region40: #{cm_baseline_forward.1} parent=0 // pred_region
    _
  $region41: #{cm_baseline_forward.1} parent=0 // pred_fallthru
    _
  %v39 = vld [vmem:[%s0] sm:$0x1]
  %v40 = vld [vmem:[%s2] sm:$0xff]
  %v41 = vld [vmem:[%s2 + $0x8] sm:$0xff]
  %v42 = vld [vmem:[%s2 + $0x10] sm:$0xff]
  %v43 = vld [vmem:[%s2 + $0x18] sm:$0xff]
  %v44 = vld [vmem:[%s2 + $0x20] sm:$0xff]
  %v45 = vld [vmem:[%s2 + $0x28] sm:$0xff]
  %v46 = vld [vmem:[%s2 + $0x30] sm:$0xff]
  %v47 = vld [vmem:[%s2 + $0x38] sm:$0xff]
  %v48 = vld [vmem:[%s2 + $0x40] sm:$0xff]
  %v49 = vld [vmem:[%s2 + $0x48] sm:$0xff]
  %v50 = vld [vmem:[%s2 + $0x50] sm:$0xff]
  %v51 = vld [vmem:[%s2 + $0x58] sm:$0xff]
  %v52 = vld [vmem:[%s2 + $0x60] sm:$0xff]
  %v53 = vld [vmem:[%s2 + $0x68] sm:$0xff]
  %v54 = vld [vmem:[%s2 + $0x70] sm:$0xff]
  %v55 = vld [vmem:[%s2 + $0x78] sm:$0xff]
  %57 = vset.pattern.permute.xlu0 0
  %58 = vperm.xlu0 %57, %v40
  %v59 = vpop.permute.xlu0 %58
  %62 = vset.pattern.permute.xlu0 0
  %63 = vperm.xlu0 %62, %v41
  %v64 = vpop.permute.xlu0 %63
  %67 = vset.pattern.permute.xlu0 0
  %68 = vperm.xlu0 %67, %v42
  %v69 = vpop.permute.xlu0 %68
  %72 = vset.pattern.permute.xlu0 0
  %73 = vperm.xlu0 %72, %v43
  %v74 = vpop.permute.xlu0 %73
  %77 = vset.pattern.permute.xlu0 0
  %78 = vperm.xlu0 %77, %v44
  %v79 = vpop.permute.xlu0 %78
  %82 = vset.pattern.permute.xlu0 0
  %83 = vperm.xlu0 %82, %v45
  %v84 = vpop.permute.xlu0 %83
  %87 = vset.pattern.permute.xlu0 0
  %88 = vperm.xlu0 %87, %v46
  %v89 = vpop.permute.xlu0 %88
  %92 = vset.pattern.permute.xlu0 0
  %93 = vperm.xlu0 %92, %v47
  %v94 = vpop.permute.xlu0 %93
  %97 = vset.pattern.permute.xlu0 0
  %98 = vperm.xlu0 %97, %v48
  %v99 = vpop.permute.xlu0 %98
  %102 = vset.pattern.permute.xlu0 0
  %103 = vperm.xlu0 %102, %v49
  %v104 = vpop.permute.xlu0 %103
  %107 = vset.pattern.permute.xlu0 0
  %108 = vperm.xlu0 %107, %v50
  %v109 = vpop.permute.xlu0 %108
  %112 = vset.pattern.permute.xlu0 0
  %113 = vperm.xlu0 %112, %v51
  %v114 = vpop.permute.xlu0 %113
  %117 = vset.pattern.permute.xlu0 0
  %118 = vperm.xlu0 %117, %v52
  %v119 = vpop.permute.xlu0 %118
  %122 = vset.pattern.permute.xlu0 0
  %123 = vperm.xlu0 %122, %v53
  %v124 = vpop.permute.xlu0 %123
  %127 = vset.pattern.permute.xlu0 0
  %128 = vperm.xlu0 %127, %v54
  %v129 = vpop.permute.xlu0 %128
  %132 = vset.pattern.permute.xlu0 0
  %133 = vperm.xlu0 %132, %v55
  %v134 = vpop.permute.xlu0 %133
  %v137 = vlaneseq
  %v138 = vshrl.u32 %v137, 7
  %v139 = vsub.s32 0, %v138
  %v140 = vrot.slane %v39, %v139
  %v142 = vmul.f32 %v59, %v140
  %v143 = vmul.f32 %v64, %v140
  %v144 = vmul.f32 %v69, %v140
  %v145 = vmul.f32 %v74, %v140
  %v146 = vmul.f32 %v79, %v140
  %v147 = vmul.f32 %v84, %v140
  %v148 = vmul.f32 %v89, %v140
  %v149 = vmul.f32 %v94, %v140
  %v150 = vmul.f32 %v99, %v140
  %v151 = vmul.f32 %v104, %v140
  %v152 = vmul.f32 %v109, %v140
  %v153 = vmul.f32 %v114, %v140
  %v154 = vmul.f32 %v119, %v140
  %v155 = vmul.f32 %v124, %v140
  %v156 = vmul.f32 %v129, %v140
  %v157 = vmul.f32 %v134, %v140
  %v158 = vld [vmem:[%s3] sm:$0xff]
  %v159 = vld [vmem:[%s3 + $0x8] sm:$0xff]
  %v160 = vld [vmem:[%s3 + $0x10] sm:$0xff]
  %v161 = vld [vmem:[%s3 + $0x18] sm:$0xff]
  %v162 = vld [vmem:[%s3 + $0x20] sm:$0xff]
  %v163 = vld [vmem:[%s3 + $0x28] sm:$0xff]
  %v164 = vld [vmem:[%s3 + $0x30] sm:$0xff]
  %v165 = vld [vmem:[%s3 + $0x38] sm:$0xff]
  %v166 = vld [vmem:[%s3 + $0x40] sm:$0xff]
  %v167 = vld [vmem:[%s3 + $0x48] sm:$0xff]
  %v168 = vld [vmem:[%s3 + $0x50] sm:$0xff]
  %v169 = vld [vmem:[%s3 + $0x58] sm:$0xff]
  %v170 = vld [vmem:[%s3 + $0x60] sm:$0xff]
  %v171 = vld [vmem:[%s3 + $0x68] sm:$0xff]
  %v172 = vld [vmem:[%s3 + $0x70] sm:$0xff]
  %v173 = vld [vmem:[%s3 + $0x78] sm:$0xff]
  %175 = vset.pattern.permute.xlu0 0
  %176 = vperm.xlu0 %175, %v158
  %v177 = vpop.permute.xlu0 %176
  %180 = vset.pattern.permute.xlu0 0
  %181 = vperm.xlu0 %180, %v159
  %v182 = vpop.permute.xlu0 %181
  %185 = vset.pattern.permute.xlu0 0
  %186 = vperm.xlu0 %185, %v160
  %v187 = vpop.permute.xlu0 %186
  %190 = vset.pattern.permute.xlu0 0
  %191 = vperm.xlu0 %190, %v161
  %v192 = vpop.permute.xlu0 %191
  %195 = vset.pattern.permute.xlu0 0
  %196 = vperm.xlu0 %195, %v162
  %v197 = vpop.permute.xlu0 %196
  %200 = vset.pattern.permute.xlu0 0
  %201 = vperm.xlu0 %200, %v163
  %v202 = vpop.permute.xlu0 %201
  %205 = vset.pattern.permute.xlu0 0
  %206 = vperm.xlu0 %205, %v164
  %v207 = vpop.permute.xlu0 %206
  %210 = vset.pattern.permute.xlu0 0
  %211 = vperm.xlu0 %210, %v165
  %v212 = vpop.permute.xlu0 %211
  %215 = vset.pattern.permute.xlu0 0
  %216 = vperm.xlu0 %215, %v166
  %v217 = vpop.permute.xlu0 %216
  %220 = vset.pattern.permute.xlu0 0
  %221 = vperm.xlu0 %220, %v167
  %v222 = vpop.permute.xlu0 %221
  %225 = vset.pattern.permute.xlu0 0
  %226 = vperm.xlu0 %225, %v168
  %v227 = vpop.permute.xlu0 %226
  %230 = vset.pattern.permute.xlu0 0
  %231 = vperm.xlu0 %230, %v169
  %v232 = vpop.permute.xlu0 %231
  %235 = vset.pattern.permute.xlu0 0
  %236 = vperm.xlu0 %235, %v170
  %v237 = vpop.permute.xlu0 %236
  %240 = vset.pattern.permute.xlu0 0
  %241 = vperm.xlu0 %240, %v171
  %v242 = vpop.permute.xlu0 %241
  %245 = vset.pattern.permute.xlu0 0
  %246 = vperm.xlu0 %245, %v172
  %v247 = vpop.permute.xlu0 %246
  %250 = vset.pattern.permute.xlu0 0
  %251 = vperm.xlu0 %250, %v173
  %v252 = vpop.permute.xlu0 %251
  %v254 = vadd.f32 %v142, %v177
  %v255 = vadd.f32 %v143, %v182
  %v256 = vadd.f32 %v144, %v187
  %v257 = vadd.f32 %v145, %v192
  %v258 = vadd.f32 %v146, %v197
  %v259 = vadd.f32 %v147, %v202
  %v260 = vadd.f32 %v148, %v207
  %v261 = vadd.f32 %v149, %v212
  %v262 = vadd.f32 %v150, %v217
  %v263 = vadd.f32 %v151, %v222
  %v264 = vadd.f32 %v152, %v227
  %v265 = vadd.f32 %v153, %v232
  %v266 = vadd.f32 %v154, %v237
  %v267 = vadd.f32 %v155, %v242
  %v268 = vadd.f32 %v156, %v247
  %v269 = vadd.f32 %v157, %v252
  %v270 = vmax.f32 %v254, 0.0
  %v271 = vmax.f32 %v255, 0.0
  %v272 = vmax.f32 %v256, 0.0
  %v273 = vmax.f32 %v257, 0.0
  %v274 = vmax.f32 %v258, 0.0
  %v275 = vmax.f32 %v259, 0.0
  %v276 = vmax.f32 %v260, 0.0
  %v277 = vmax.f32 %v261, 0.0
  %v278 = vmax.f32 %v262, 0.0
  %v279 = vmax.f32 %v263, 0.0
  %v280 = vmax.f32 %v264, 0.0
  %v281 = vmax.f32 %v265, 0.0
  %v282 = vmax.f32 %v266, 0.0
  %v283 = vmax.f32 %v267, 0.0
  %v284 = vmax.f32 %v268, 0.0
  %v285 = vmax.f32 %v269, 0.0
  %v286 = vld [vmem:[%s4] sm:$0xff]
  %v287 = vld [vmem:[%s4 + $0x8] sm:$0xff]
  %v288 = vld [vmem:[%s4 + $0x10] sm:$0xff]
  %v289 = vld [vmem:[%s4 + $0x18] sm:$0xff]
  %v290 = vld [vmem:[%s4 + $0x20] sm:$0xff]
  %v291 = vld [vmem:[%s4 + $0x28] sm:$0xff]
  %v292 = vld [vmem:[%s4 + $0x30] sm:$0xff]
  %v293 = vld [vmem:[%s4 + $0x38] sm:$0xff]
  %v294 = vld [vmem:[%s4 + $0x40] sm:$0xff]
  %v295 = vld [vmem:[%s4 + $0x48] sm:$0xff]
  %v296 = vld [vmem:[%s4 + $0x50] sm:$0xff]
  %v297 = vld [vmem:[%s4 + $0x58] sm:$0xff]
  %v298 = vld [vmem:[%s4 + $0x60] sm:$0xff]
  %v299 = vld [vmem:[%s4 + $0x68] sm:$0xff]
  %v300 = vld [vmem:[%s4 + $0x70] sm:$0xff]
  %v301 = vld [vmem:[%s4 + $0x78] sm:$0xff]
  %v302 = vld [vmem:[%s5] sm:$0xff]
  %v303 = vld [vmem:[%s5 + $0x8] sm:$0xff]
  %v304 = vld [vmem:[%s5 + $0x10] sm:$0xff]
  %v305 = vld [vmem:[%s5 + $0x18] sm:$0xff]
  %v306 = vld [vmem:[%s5 + $0x20] sm:$0xff]
  %v307 = vld [vmem:[%s5 + $0x28] sm:$0xff]
  %v308 = vld [vmem:[%s5 + $0x30] sm:$0xff]
  %v309 = vld [vmem:[%s5 + $0x38] sm:$0xff]
  %v310 = vld [vmem:[%s5 + $0x40] sm:$0xff]
  %v311 = vld [vmem:[%s5 + $0x48] sm:$0xff]
  %v312 = vld [vmem:[%s5 + $0x50] sm:$0xff]
  %v313 = vld [vmem:[%s5 + $0x58] sm:$0xff]
  %v314 = vld [vmem:[%s5 + $0x60] sm:$0xff]
  %v315 = vld [vmem:[%s5 + $0x68] sm:$0xff]
  %v316 = vld [vmem:[%s5 + $0x70] sm:$0xff]
  %v317 = vld [vmem:[%s5 + $0x78] sm:$0xff]
  %319 = vset.pattern.permute.xlu0 0
  %320 = vperm.xlu0 %319, %v302
  %v321 = vpop.permute.xlu0 %320
  %324 = vset.pattern.permute.xlu0 0
  %325 = vperm.xlu0 %324, %v303
  %v326 = vpop.permute.xlu0 %325
  %329 = vset.pattern.permute.xlu0 0
  %330 = vperm.xlu0 %329, %v304
  %v331 = vpop.permute.xlu0 %330
  %334 = vset.pattern.permute.xlu0 0
  %335 = vperm.xlu0 %334, %v305
  %v336 = vpop.permute.xlu0 %335
  %339 = vset.pattern.permute.xlu0 0
  %340 = vperm.xlu0 %339, %v306
  %v341 = vpop.permute.xlu0 %340
  %344 = vset.pattern.permute.xlu0 0
  %345 = vperm.xlu0 %344, %v307
  %v346 = vpop.permute.xlu0 %345
  %349 = vset.pattern.permute.xlu0 0
  %350 = vperm.xlu0 %349, %v308
  %v351 = vpop.permute.xlu0 %350
  %354 = vset.pattern.permute.xlu0 0
  %355 = vperm.xlu0 %354, %v309
  %v356 = vpop.permute.xlu0 %355
  %359 = vset.pattern.permute.xlu0 0
  %360 = vperm.xlu0 %359, %v310
  %v361 = vpop.permute.xlu0 %360
  %364 = vset.pattern.permute.xlu0 0
  %365 = vperm.xlu0 %364, %v311
  %v366 = vpop.permute.xlu0 %365
  %369 = vset.pattern.permute.xlu0 0
  %370 = vperm.xlu0 %369, %v312
  %v371 = vpop.permute.xlu0 %370
  %374 = vset.pattern.permute.xlu0 0
  %375 = vperm.xlu0 %374, %v313
  %v376 = vpop.permute.xlu0 %375
  %379 = vset.pattern.permute.xlu0 0
  %380 = vperm.xlu0 %379, %v314
  %v381 = vpop.permute.xlu0 %380
  %384 = vset.pattern.permute.xlu0 0
  %385 = vperm.xlu0 %384, %v315
  %v386 = vpop.permute.xlu0 %385
  %389 = vset.pattern.permute.xlu0 0
  %390 = vperm.xlu0 %389, %v316
  %v391 = vpop.permute.xlu0 %390
  %394 = vset.pattern.permute.xlu0 0
  %395 = vperm.xlu0 %394, %v317
  %v396 = vpop.permute.xlu0 %395
  %398 = vmatprep.subr.mxu0 0.0
  %399 = vmatpush1.msra.mxu0 %v270
  %400 = vmatprep.subr.mxu0 0.0
  %401 = vmatpush1.msra.mxu0 %v271
  %402 = vmatprep.subr.mxu0 0.0
  %403 = vmatpush1.msra.mxu0 %v272
  %404 = vmatprep.subr.mxu0 0.0
  %405 = vmatpush1.msra.mxu0 %v273
  %406 = vmatprep.subr.mxu0 0.0
  %407 = vmatpush1.msra.mxu0 %v274
  %408 = vmatprep.subr.mxu0 0.0
  %409 = vmatpush1.msra.mxu0 %v275
  %410 = vmatprep.subr.mxu0 0.0
  %411 = vmatpush1.msra.mxu0 %v276
  %412 = vmatprep.subr.mxu0 0.0
  %413 = vmatpush1.msra.mxu0 %v277
  %414 = vmatprep.subr.mxu0 0.0
  %415 = vmatpush1.msra.mxu0 %v278
  %416 = vmatprep.subr.mxu0 0.0
  %417 = vmatpush1.msra.mxu0 %v279
  %418 = vmatprep.subr.mxu0 0.0
  %419 = vmatpush1.msra.mxu0 %v280
  %420 = vmatprep.subr.mxu0 0.0
  %421 = vmatpush1.msra.mxu0 %v281
  %422 = vmatprep.subr.mxu0 0.0
  %423 = vmatpush1.msra.mxu0 %v282
  %424 = vmatprep.subr.mxu0 0.0
  %425 = vmatpush1.msra.mxu0 %v283
  %426 = vmatprep.subr.mxu0 0.0
  %427 = vmatpush1.msra.mxu0 %v284
  %428 = vmatprep.subr.mxu0 0.0
  %429 = vmatpush1.msra.mxu0 %v285
  %430 = vmatprep.subr.mxu0 0.0
  %431 = vmatpush1.msra.mxu0 0.0
  %432 = vmatprep.subr.mxu0 0.0
  %433 = vmatpush1.msra.mxu0 0.0
  %434 = vmatprep.subr.mxu0 0.0
  %435 = vmatpush1.msra.mxu0 0.0
  %436 = vmatprep.subr.mxu0 0.0
  %437 = vmatpush1.msra.mxu0 0.0
  %438 = vmatprep.subr.mxu0 0.0
  %439 = vmatpush1.msra.mxu0 0.0
  %440 = vmatprep.subr.mxu0 0.0
  %441 = vmatpush1.msra.mxu0 0.0
  %442 = vmatprep.subr.mxu0 0.0
  %443 = vmatpush1.msra.mxu0 0.0
  %444 = vmatprep.subr.mxu0 0.0
  %445 = vmatpush1.msra.mxu0 0.0
  %446 = vmatprep.subr.mxu0 0.0
  %447 = vmatpush1.msra.mxu0 0.0
  %448 = vmatprep.subr.mxu0 0.0
  %449 = vmatpush1.msra.mxu0 0.0
  %450 = vmatprep.subr.mxu0 0.0
  %451 = vmatpush1.msra.mxu0 0.0
  %452 = vmatprep.subr.mxu0 0.0
  %453 = vmatpush1.msra.mxu0 0.0
  %454 = vmatprep.subr.mxu0 0.0
  %455 = vmatpush1.msra.mxu0 0.0
  %456 = vmatprep.subr.mxu0 0.0
  %457 = vmatpush1.msra.mxu0 0.0
  %458 = vmatprep.subr.mxu0 0.0
  %459 = vmatpush1.msra.mxu0 0.0
  %460 = vmatprep.subr.mxu0 0.0
  %461 = vmatpush1.msra.mxu0 0.0
  %462 = vmatprep.mubr.f32.mxu0 0.0
  %463 = vmatmul.mubr.f32.gmra.mrb[0].mxu0 %v286
  %v464 = vpop.f32.mrb[0].mxu0
  %v465 = vadd.f32 %v321, %v464
  %v466 = vpop.f32.mrb[0].mxu0
  %467 = vmatprep.mubr.f32.mxu0 0.0
  %468 = vmatmul.mubr.f32.gmra.mrb[0].mxu0 %v287
  %v469 = vpop.f32.mrb[0].mxu0
  %v470 = vadd.f32 %v326, %v469
  %v471 = vpop.f32.mrb[0].mxu0
  %472 = vmatprep.mubr.f32.mxu0 0.0
  %473 = vmatmul.mubr.f32.gmra.mrb[0].mxu0 %v288
  %v474 = vpop.f32.mrb[0].mxu0
  %v475 = vadd.f32 %v331, %v474
  %v476 = vpop.f32.mrb[0].mxu0
  %477 = vmatprep.mubr.f32.mxu0 0.0
  %478 = vmatmul.mubr.f32.gmra.mrb[0].mxu0 %v289
  %v479 = vpop.f32.mrb[0].mxu0
  %v480 = vadd.f32 %v336, %v479
  %v481 = vpop.f32.mrb[0].mxu0
  %482 = vmatprep.mubr.f32.mxu0 0.0
  %483 = vmatmul.mubr.f32.gmra.mrb[0].mxu0 %v290
  %v484 = vpop.f32.mrb[0].mxu0
  %v485 = vadd.f32 %v341, %v484
  %v486 = vpop.f32.mrb[0].mxu0
  %487 = vmatprep.mubr.f32.mxu0 0.0
  %488 = vmatmul.mubr.f32.gmra.mrb[0].mxu0 %v291
  %v489 = vpop.f32.mrb[0].mxu0
  %v490 = vadd.f32 %v346, %v489
  %v491 = vpop.f32.mrb[0].mxu0
  %492 = vmatprep.mubr.f32.mxu0 0.0
  %493 = vmatmul.mubr.f32.gmra.mrb[0].mxu0 %v292
  %v494 = vpop.f32.mrb[0].mxu0
  %v495 = vadd.f32 %v351, %v494
  %v496 = vpop.f32.mrb[0].mxu0
  %497 = vmatprep.mubr.f32.mxu0 0.0
  %498 = vmatmul.mubr.f32.gmra.mrb[0].mxu0 %v293
  %v499 = vpop.f32.mrb[0].mxu0
  %v500 = vadd.f32 %v356, %v499
  %v501 = vpop.f32.mrb[0].mxu0
  %502 = vmatprep.mubr.f32.mxu0 0.0
  %503 = vmatmul.mubr.f32.gmra.mrb[0].mxu0 %v294
  %v504 = vpop.f32.mrb[0].mxu0
  %v505 = vadd.f32 %v361, %v504
  %v506 = vpop.f32.mrb[0].mxu0
  %507 = vmatprep.mubr.f32.mxu0 0.0
  %508 = vmatmul.mubr.f32.gmra.mrb[0].mxu0 %v295
  %v509 = vpop.f32.mrb[0].mxu0
  %v510 = vadd.f32 %v366, %v509
  %v511 = vpop.f32.mrb[0].mxu0
  %512 = vmatprep.mubr.f32.mxu0 0.0
  %513 = vmatmul.mubr.f32.gmra.mrb[0].mxu0 %v296
  %v514 = vpop.f32.mrb[0].mxu0
  %v515 = vadd.f32 %v371, %v514
  %v516 = vpop.f32.mrb[0].mxu0
  %517 = vmatprep.mubr.f32.mxu0 0.0
  %518 = vmatmul.mubr.f32.gmra.mrb[0].mxu0 %v297
  %v519 = vpop.f32.mrb[0].mxu0
  %v520 = vadd.f32 %v376, %v519
  %v521 = vpop.f32.mrb[0].mxu0
  %522 = vmatprep.mubr.f32.mxu0 0.0
  %523 = vmatmul.mubr.f32.gmra.mrb[0].mxu0 %v298
  %v524 = vpop.f32.mrb[0].mxu0
  %v525 = vadd.f32 %v381, %v524
  %v526 = vpop.f32.mrb[0].mxu0
  %527 = vmatprep.mubr.f32.mxu0 0.0
  %528 = vmatmul.mubr.f32.gmra.mrb[0].mxu0 %v299
  %v529 = vpop.f32.mrb[0].mxu0
  %v530 = vadd.f32 %v386, %v529
  %v531 = vpop.f32.mrb[0].mxu0
  %532 = vmatprep.mubr.f32.mxu0 0.0
  %533 = vmatmul.mubr.f32.gmra.mrb[0].mxu0 %v300
  %v534 = vpop.f32.mrb[0].mxu0
  %v535 = vadd.f32 %v391, %v534
  %v536 = vpop.f32.mrb[0].mxu0
  %537 = vmatprep.mubr.f32.mxu0 0.0
  %538 = vmatmul.mubr.f32.gmra.mrb[0].mxu0 %v301
  %v539 = vpop.f32.mrb[0].mxu0
  %v540 = vadd.f32 %v396, %v539
  %v541 = vpop.f32.mrb[0].mxu0
  %542 = vdwg.mxu0
  %v543 = vmax.f32 %v465, 0.0
  %v544 = vmax.f32 %v470, 0.0
  %v545 = vmax.f32 %v475, 0.0
  %v546 = vmax.f32 %v480, 0.0
  %v547 = vmax.f32 %v485, 0.0
  %v548 = vmax.f32 %v490, 0.0
  %v549 = vmax.f32 %v495, 0.0
  %v550 = vmax.f32 %v500, 0.0
  %v551 = vmax.f32 %v505, 0.0
  %v552 = vmax.f32 %v510, 0.0
  %v553 = vmax.f32 %v515, 0.0
  %v554 = vmax.f32 %v520, 0.0
  %v555 = vmax.f32 %v525, 0.0
  %v556 = vmax.f32 %v530, 0.0
  %v557 = vmax.f32 %v535, 0.0
  %v558 = vmax.f32 %v540, 0.0
  %v559 = vld [vmem:[%s6] sm:$0xff]
  %v560 = vld [vmem:[%s6 + $0x8] sm:$0xff]
  %v561 = vld [vmem:[%s6 + $0x10] sm:$0xff]
  %v562 = vld [vmem:[%s6 + $0x18] sm:$0xff]
  %v563 = vld [vmem:[%s6 + $0x20] sm:$0xff]
  %v564 = vld [vmem:[%s6 + $0x28] sm:$0xff]
  %v565 = vld [vmem:[%s6 + $0x30] sm:$0xff]
  %v566 = vld [vmem:[%s6 + $0x38] sm:$0xff]
  %v567 = vld [vmem:[%s6 + $0x40] sm:$0xff]
  %v568 = vld [vmem:[%s6 + $0x48] sm:$0xff]
  %v569 = vld [vmem:[%s6 + $0x50] sm:$0xff]
  %v570 = vld [vmem:[%s6 + $0x58] sm:$0xff]
  %v571 = vld [vmem:[%s6 + $0x60] sm:$0xff]
  %v572 = vld [vmem:[%s6 + $0x68] sm:$0xff]
  %v573 = vld [vmem:[%s6 + $0x70] sm:$0xff]
  %v574 = vld [vmem:[%s6 + $0x78] sm:$0xff]
  %v575 = vld [vmem:[%s7] sm:$0xff]
  %v576 = vld [vmem:[%s7 + $0x8] sm:$0xff]
  %v577 = vld [vmem:[%s7 + $0x10] sm:$0xff]
  %v578 = vld [vmem:[%s7 + $0x18] sm:$0xff]
  %v579 = vld [vmem:[%s7 + $0x20] sm:$0xff]
  %v580 = vld [vmem:[%s7 + $0x28] sm:$0xff]
  %v581 = vld [vmem:[%s7 + $0x30] sm:$0xff]
  %v582 = vld [vmem:[%s7 + $0x38] sm:$0xff]
  %v583 = vld [vmem:[%s7 + $0x40] sm:$0xff]
  %v584 = vld [vmem:[%s7 + $0x48] sm:$0xff]
  %v585 = vld [vmem:[%s7 + $0x50] sm:$0xff]
  %v586 = vld [vmem:[%s7 + $0x58] sm:$0xff]
  %v587 = vld [vmem:[%s7 + $0x60] sm:$0xff]
  %v588 = vld [vmem:[%s7 + $0x68] sm:$0xff]
  %v589 = vld [vmem:[%s7 + $0x70] sm:$0xff]
  %v590 = vld [vmem:[%s7 + $0x78] sm:$0xff]
  %592 = vset.pattern.permute.xlu0 0
  %593 = vperm.xlu0 %592, %v575
  %v594 = vpop.permute.xlu0 %593
  %597 = vset.pattern.permute.xlu0 0
  %598 = vperm.xlu0 %597, %v576
  %v599 = vpop.permute.xlu0 %598
  %602 = vset.pattern.permute.xlu0 0
  %603 = vperm.xlu0 %602, %v577
  %v604 = vpop.permute.xlu0 %603
  %607 = vset.pattern.permute.xlu0 0
  %608 = vperm.xlu0 %607, %v578
  %v609 = vpop.permute.xlu0 %608
  %612 = vset.pattern.permute.xlu0 0
  %613 = vperm.xlu0 %612, %v579
  %v614 = vpop.permute.xlu0 %613
  %617 = vset.pattern.permute.xlu0 0
  %618 = vperm.xlu0 %617, %v580
  %v619 = vpop.permute.xlu0 %618
  %622 = vset.pattern.permute.xlu0 0
  %623 = vperm.xlu0 %622, %v581
  %v624 = vpop.permute.xlu0 %623
  %627 = vset.pattern.permute.xlu0 0
  %628 = vperm.xlu0 %627, %v582
  %v629 = vpop.permute.xlu0 %628
  %632 = vset.pattern.permute.xlu0 0
  %633 = vperm.xlu0 %632, %v583
  %v634 = vpop.permute.xlu0 %633
  %637 = vset.pattern.permute.xlu0 0
  %638 = vperm.xlu0 %637, %v584
  %v639 = vpop.permute.xlu0 %638
  %642 = vset.pattern.permute.xlu0 0
  %643 = vperm.xlu0 %642, %v585
  %v644 = vpop.permute.xlu0 %643
  %647 = vset.pattern.permute.xlu0 0
  %648 = vperm.xlu0 %647, %v586
  %v649 = vpop.permute.xlu0 %648
  %652 = vset.pattern.permute.xlu0 0
  %653 = vperm.xlu0 %652, %v587
  %v654 = vpop.permute.xlu0 %653
  %657 = vset.pattern.permute.xlu0 0
  %658 = vperm.xlu0 %657, %v588
  %v659 = vpop.permute.xlu0 %658
  %662 = vset.pattern.permute.xlu0 0
  %663 = vperm.xlu0 %662, %v589
  %v664 = vpop.permute.xlu0 %663
  %667 = vset.pattern.permute.xlu0 0
  %668 = vperm.xlu0 %667, %v590
  %v669 = vpop.permute.xlu0 %668
  %671 = vmatprep.subr.mxu0 0.0
  %672 = vmatpush1.msra.mxu0 %v543
  %673 = vmatprep.subr.mxu0 0.0
  %674 = vmatpush1.msra.mxu0 %v544
  %675 = vmatprep.subr.mxu0 0.0
  %676 = vmatpush1.msra.mxu0 %v545
  %677 = vmatprep.subr.mxu0 0.0
  %678 = vmatpush1.msra.mxu0 %v546
  %679 = vmatprep.subr.mxu0 0.0
  %680 = vmatpush1.msra.mxu0 %v547
  %681 = vmatprep.subr.mxu0 0.0
  %682 = vmatpush1.msra.mxu0 %v548
  %683 = vmatprep.subr.mxu0 0.0
  %684 = vmatpush1.msra.mxu0 %v549
  %685 = vmatprep.subr.mxu0 0.0
  %686 = vmatpush1.msra.mxu0 %v550
  %687 = vmatprep.subr.mxu0 0.0
  %688 = vmatpush1.msra.mxu0 %v551
  %689 = vmatprep.subr.mxu0 0.0
  %690 = vmatpush1.msra.mxu0 %v552
  %691 = vmatprep.subr.mxu0 0.0
  %692 = vmatpush1.msra.mxu0 %v553
  %693 = vmatprep.subr.mxu0 0.0
  %694 = vmatpush1.msra.mxu0 %v554
  %695 = vmatprep.subr.mxu0 0.0
  %696 = vmatpush1.msra.mxu0 %v555
  %697 = vmatprep.subr.mxu0 0.0
  %698 = vmatpush1.msra.mxu0 %v556
  %699 = vmatprep.subr.mxu0 0.0
  %700 = vmatpush1.msra.mxu0 %v557
  %701 = vmatprep.subr.mxu0 0.0
  %702 = vmatpush1.msra.mxu0 %v558
  %703 = vmatprep.subr.mxu0 0.0
  %704 = vmatpush1.msra.mxu0 0.0
  %705 = vmatprep.subr.mxu0 0.0
  %706 = vmatpush1.msra.mxu0 0.0
  %707 = vmatprep.subr.mxu0 0.0
  %708 = vmatpush1.msra.mxu0 0.0
  %709 = vmatprep.subr.mxu0 0.0
  %710 = vmatpush1.msra.mxu0 0.0
  %711 = vmatprep.subr.mxu0 0.0
  %712 = vmatpush1.msra.mxu0 0.0
  %713 = vmatprep.subr.mxu0 0.0
  %714 = vmatpush1.msra.mxu0 0.0
  %715 = vmatprep.subr.mxu0 0.0
  %716 = vmatpush1.msra.mxu0 0.0
  %717 = vmatprep.subr.mxu0 0.0
  %718 = vmatpush1.msra.mxu0 0.0
  %719 = vmatprep.subr.mxu0 0.0
  %720 = vmatpush1.msra.mxu0 0.0
  %721 = vmatprep.subr.mxu0 0.0
  %722 = vmatpush1.msra.mxu0 0.0
  %723 = vmatprep.subr.mxu0 0.0
  %724 = vmatpush1.msra.mxu0 0.0
  %725 = vmatprep.subr.mxu0 0.0
  %726 = vmatpush1.msra.mxu0 0.0
  %727 = vmatprep.subr.mxu0 0.0
  %728 = vmatpush1.msra.mxu0 0.0
  %729 = vmatprep.subr.mxu0 0.0
  %730 = vmatpush1.msra.mxu0 0.0
  %731 = vmatprep.subr.mxu0 0.0
  %732 = vmatpush1.msra.mxu0 0.0
  %733 = vmatprep.subr.mxu0 0.0
  %734 = vmatpush1.msra.mxu0 0.0
  %735 = vmatprep.mubr.f32.mxu0 0.0
  %736 = vmatmul.mubr.f32.gmra.mrb[0].mxu0 %v559
  %v737 = vpop.f32.mrb[0].mxu0
  %v738 = vadd.f32 %v594, %v737
  %v739 = vpop.f32.mrb[0].mxu0
  %740 = vmatprep.mubr.f32.mxu0 0.0
  %741 = vmatmul.mubr.f32.gmra.mrb[0].mxu0 %v560
  %v742 = vpop.f32.mrb[0].mxu0
  %v743 = vadd.f32 %v599, %v742
  %v744 = vpop.f32.mrb[0].mxu0
  %745 = vmatprep.mubr.f32.mxu0 0.0
  %746 = vmatmul.mubr.f32.gmra.mrb[0].mxu0 %v561
  %v747 = vpop.f32.mrb[0].mxu0
  %v748 = vadd.f32 %v604, %v747
  %v749 = vpop.f32.mrb[0].mxu0
  %750 = vmatprep.mubr.f32.mxu0 0.0
  %751 = vmatmul.mubr.f32.gmra.mrb[0].mxu0 %v562
  %v752 = vpop.f32.mrb[0].mxu0
  %v753 = vadd.f32 %v609, %v752
  %v754 = vpop.f32.mrb[0].mxu0
  %755 = vmatprep.mubr.f32.mxu0 0.0
  %756 = vmatmul.mubr.f32.gmra.mrb[0].mxu0 %v563
  %v757 = vpop.f32.mrb[0].mxu0
  %v758 = vadd.f32 %v614, %v757
  %v759 = vpop.f32.mrb[0].mxu0
  %760 = vmatprep.mubr.f32.mxu0 0.0
  %761 = vmatmul.mubr.f32.gmra.mrb[0].mxu0 %v564
  %v762 = vpop.f32.mrb[0].mxu0
  %v763 = vadd.f32 %v619, %v762
  %v764 = vpop.f32.mrb[0].mxu0
  %765 = vmatprep.mubr.f32.mxu0 0.0
  %766 = vmatmul.mubr.f32.gmra.mrb[0].mxu0 %v565
  %v767 = vpop.f32.mrb[0].mxu0
  %v768 = vadd.f32 %v624, %v767
  %v769 = vpop.f32.mrb[0].mxu0
  %770 = vmatprep.mubr.f32.mxu0 0.0
  %771 = vmatmul.mubr.f32.gmra.mrb[0].mxu0 %v566
  %v772 = vpop.f32.mrb[0].mxu0
  %v773 = vadd.f32 %v629, %v772
  %v774 = vpop.f32.mrb[0].mxu0
  %775 = vmatprep.mubr.f32.mxu0 0.0
  %776 = vmatmul.mubr.f32.gmra.mrb[0].mxu0 %v567
  %v777 = vpop.f32.mrb[0].mxu0
  %v778 = vadd.f32 %v634, %v777
  %v779 = vpop.f32.mrb[0].mxu0
  %780 = vmatprep.mubr.f32.mxu0 0.0
  %781 = vmatmul.mubr.f32.gmra.mrb[0].mxu0 %v568
  %v782 = vpop.f32.mrb[0].mxu0
  %v783 = vadd.f32 %v639, %v782
  %v784 = vpop.f32.mrb[0].mxu0
  %785 = vmatprep.mubr.f32.mxu0 0.0
  %786 = vmatmul.mubr.f32.gmra.mrb[0].mxu0 %v569
  %v787 = vpop.f32.mrb[0].mxu0
  %v788 = vadd.f32 %v644, %v787
  %v789 = vpop.f32.mrb[0].mxu0
  %790 = vmatprep.mubr.f32.mxu0 0.0
  %791 = vmatmul.mubr.f32.gmra.mrb[0].mxu0 %v570
  %v792 = vpop.f32.mrb[0].mxu0
  %v793 = vadd.f32 %v649, %v792
  %v794 = vpop.f32.mrb[0].mxu0
  %795 = vmatprep.mubr.f32.mxu0 0.0
  %796 = vmatmul.mubr.f32.gmra.mrb[0].mxu0 %v571
  %v797 = vpop.f32.mrb[0].mxu0
  %v798 = vadd.f32 %v654, %v797
  %v799 = vpop.f32.mrb[0].mxu0
  %800 = vmatprep.mubr.f32.mxu0 0.0
  %801 = vmatmul.mubr.f32.gmra.mrb[0].mxu0 %v572
  %v802 = vpop.f32.mrb[0].mxu0
  %v803 = vadd.f32 %v659, %v802
  %v804 = vpop.f32.mrb[0].mxu0
  %805 = vmatprep.mubr.f32.mxu0 0.0
  %806 = vmatmul.mubr.f32.gmra.mrb[0].mxu0 %v573
  %v807 = vpop.f32.mrb[0].mxu0
  %v808 = vadd.f32 %v664, %v807
  %v809 = vpop.f32.mrb[0].mxu0
  %810 = vmatprep.mubr.f32.mxu0 0.0
  %811 = vmatmul.mubr.f32.gmra.mrb[0].mxu0 %v574
  %v812 = vpop.f32.mrb[0].mxu0
  %v813 = vadd.f32 %v669, %v812
  %v814 = vpop.f32.mrb[0].mxu0
  %815 = vdwg.mxu0
  %v816 = vmax.f32 %v738, 0.0
  %v817 = vmax.f32 %v743, 0.0
  %v818 = vmax.f32 %v748, 0.0
  %v819 = vmax.f32 %v753, 0.0
  %v820 = vmax.f32 %v758, 0.0
  %v821 = vmax.f32 %v763, 0.0
  %v822 = vmax.f32 %v768, 0.0
  %v823 = vmax.f32 %v773, 0.0
  %v824 = vmax.f32 %v778, 0.0
  %v825 = vmax.f32 %v783, 0.0
  %v826 = vmax.f32 %v788, 0.0
  %v827 = vmax.f32 %v793, 0.0
  %v828 = vmax.f32 %v798, 0.0
  %v829 = vmax.f32 %v803, 0.0
  %v830 = vmax.f32 %v808, 0.0
  %v831 = vmax.f32 %v813, 0.0
  %v832 = vld [vmem:[%s8] sm:$0xff]
  %833 = vmatprep.subr.mxu0 0.0
  %834 = vmatpush1.msra.mxu0 %v816
  %835 = vmatprep.subr.mxu0 0.0
  %836 = vmatpush1.msra.mxu0 %v817
  %837 = vmatprep.subr.mxu0 0.0
  %838 = vmatpush1.msra.mxu0 %v818
  %839 = vmatprep.subr.mxu0 0.0
  %840 = vmatpush1.msra.mxu0 %v819
  %841 = vmatprep.subr.mxu0 0.0
  %842 = vmatpush1.msra.mxu0 %v820
  %843 = vmatprep.subr.mxu0 0.0
  %844 = vmatpush1.msra.mxu0 %v821
  %845 = vmatprep.subr.mxu0 0.0
  %846 = vmatpush1.msra.mxu0 %v822
  %847 = vmatprep.subr.mxu0 0.0
  %848 = vmatpush1.msra.mxu0 %v823
  %849 = vmatprep.subr.mxu0 0.0
  %850 = vmatpush1.msra.mxu0 %v824
  %851 = vmatprep.subr.mxu0 0.0
  %852 = vmatpush1.msra.mxu0 %v825
  %853 = vmatprep.subr.mxu0 0.0
  %854 = vmatpush1.msra.mxu0 %v826
  %855 = vmatprep.subr.mxu0 0.0
  %856 = vmatpush1.msra.mxu0 %v827
  %857 = vmatprep.subr.mxu0 0.0
  %858 = vmatpush1.msra.mxu0 %v828
  %859 = vmatprep.subr.mxu0 0.0
  %860 = vmatpush1.msra.mxu0 %v829
  %861 = vmatprep.subr.mxu0 0.0
  %862 = vmatpush1.msra.mxu0 %v830
  %863 = vmatprep.subr.mxu0 0.0
  %864 = vmatpush1.msra.mxu0 %v831
  %865 = vmatprep.subr.mxu0 0.0
  %866 = vmatpush1.msra.mxu0 0.0
  %867 = vmatprep.subr.mxu0 0.0
  %868 = vmatpush1.msra.mxu0 0.0
  %869 = vmatprep.subr.mxu0 0.0
  %870 = vmatpush1.msra.mxu0 0.0
  %871 = vmatprep.subr.mxu0 0.0
  %872 = vmatpush1.msra.mxu0 0.0
  %873 = vmatprep.subr.mxu0 0.0
  %874 = vmatpush1.msra.mxu0 0.0
  %875 = vmatprep.subr.mxu0 0.0
  %876 = vmatpush1.msra.mxu0 0.0
  %877 = vmatprep.subr.mxu0 0.0
  %878 = vmatpush1.msra.mxu0 0.0
  %879 = vmatprep.subr.mxu0 0.0
  %880 = vmatpush1.msra.mxu0 0.0
  %881 = vmatprep.subr.mxu0 0.0
  %882 = vmatpush1.msra.mxu0 0.0
  %883 = vmatprep.subr.mxu0 0.0
  %884 = vmatpush1.msra.mxu0 0.0
  %885 = vmatprep.subr.mxu0 0.0
  %886 = vmatpush1.msra.mxu0 0.0
  %887 = vmatprep.subr.mxu0 0.0
  %888 = vmatpush1.msra.mxu0 0.0
  %889 = vmatprep.subr.mxu0 0.0
  %890 = vmatpush1.msra.mxu0 0.0
  %891 = vmatprep.subr.mxu0 0.0
  %892 = vmatpush1.msra.mxu0 0.0
  %893 = vmatprep.subr.mxu0 0.0
  %894 = vmatpush1.msra.mxu0 0.0
  %895 = vmatprep.subr.mxu0 0.0
  %896 = vmatpush1.msra.mxu0 0.0
  %897 = vmatprep.mubr.f32.mxu0 0.0
  %898 = vmatmul.mubr.f32.gmra.mrb[0].mxu0 %v832
  %v899 = vpop.f32.mrb[0].mxu0
  %v900 = vadd.f32 0.0, %v899
  %v901 = vpop.f32.mrb[0].mxu0
  %902 = vdwg.mxu0
  %v903 = vld [vmem:[#allocation2] sm:$0x1]
  %905 = vset.pattern.permute.xlu0 0
  %906 = vperm.xlu0 %905, %v903
  %v907 = vpop.permute.xlu0 %906
  %v909 = vlaneseq
  %v910 = vshrl.u32 %v909, 7
  %v911 = vsub.s32 0, %v910
  %v912 = vrot.slane %v907, %v911
  %v913 = vadd.f32 %v900, %v912
  %914 = vst [vmem:[%s10] sm:$0x1] %v913
  %v915 = vld [vmem:[%s1] sm:$0x1]
  %v916 = vsub.f32 %v915, %v913
  %v917 = vmul.f32 %v916, %v916
  %918 = vst [vmem:[%s11] sm:$0x1] %v917
  // Predicated region
  $region42: #{cm_baseline_forward.1} parent=0 // pred_check
    _
  $region43: #{cm_baseline_forward.1} parent=0 // pred_check_branch
    %920 = sbr.rel (0) target = $region45
  $region44: #{cm_baseline_forward.1} parent=0 // pred_region
    _
  $region45: #{cm_baseline_forward.1} parent=0 // pred_fallthru
    _
  // Predicated region
  $region46: #{cm_baseline_forward.1} parent=0 // pred_check
    _
  $region47: #{cm_baseline_forward.1} parent=0 // pred_check_branch
    %922 = sbr.rel (0) target = $region49
  $region48: #{cm_baseline_forward.1} parent=0 // pred_region
    _
  $region49: #{cm_baseline_forward.1} parent=0 // pred_fallthru
    _
  // Predicated region
  $region50: #{cm_baseline_forward.1} parent=0 // pred_check
    _
  $region51: #{cm_baseline_forward.1} parent=0 // pred_check_branch
    %924 = sbr.rel (0) target = $region53
  $region52: #{cm_baseline_forward.1} parent=0 // pred_region
    _
  $region53: #{cm_baseline_forward.1} parent=0 // pred_fallthru
    _
  // Predicated region
  $region54: #{cm_baseline_forward.1} parent=0 // pred_check
    _
  $region55: #{cm_baseline_forward.1} parent=0 // pred_check_branch
    %926 = sbr.rel (0) target = $region57
  $region56: #{cm_baseline_forward.1} parent=0 // pred_region
    _
  $region57: #{cm_baseline_forward.1} parent=0 // pred_fallthru
    _

</llo_original>
